<compile_context>
chip_gen: v5e
topology: v5e:2x2
jax: 0.10.0
libtpu: 0.0.40
codegen_flags: <defaults>
</compile_context>

<pallas_src>
import functools

import jax
import jax.numpy as jnp
from jax.experimental import pallas as pl
from jax.experimental.pallas import tpu as pltpu


def _ms_cam_kernel(x_ref, w1_ref, b1_ref, w2l_ref, b2l_ref, w2g_ref, b2g_ref,
                   o_ref, *, inv_hw, mid, bblk):
    # x_ref / o_ref blocks: (bblk, c, hw_pad); weights are small full arrays.
    w1 = w1_ref[...]        # (2*mid, c)  stacked [W1_local; W1_global] (BN folded)
    b1 = b1_ref[...]        # (2*mid, 1)  stacked [b1_local; b1_global]
    w2l = w2l_ref[...]      # (c, 2*mid)  [W2_local, 0]  (zero cols kill global rows)
    b2l = b2l_ref[...]      # (c, 1)
    w2g = w2g_ref[...]      # (c, mid)
    b2g = b2g_ref[...]      # (c, 1)

    def one_batch(ib, carry):
        x = x_ref[ib]                                                   # (c, hw)

        # -- first 1x1 conv of BOTH branches in a single MXU matmul ----------
        t = jnp.dot(w1, x, preferred_element_type=jnp.float32)          # (2m, hw)

        # -- global branch: avg-pool commutes with the 1x1 conv, so take the
        #    spatial mean of the W1g rows, then bias + ReLU AFTER the mean. --
        s = jnp.sum(t, axis=1, keepdims=True) * inv_hw                  # (2m, 1)
        tg = jnp.maximum(s[mid:, :] + b1[mid:, :], 0.0)                 # (m, 1)
        # second global layer (K=mid, N=1): VPU broadcast-FMAs, no MXU launch.
        gg = b2g                                                        # (c, 1)
        for k in range(mid):
            gg = gg + w2g[:, k:k + 1] * tg[k:k + 1, :]                  # (c, 1)

        # -- local branch ------------------------------------------------------
        tl = jnp.maximum(t + b1, 0.0)                                   # (2m, hw)
        l = jnp.dot(w2l, tl, preferred_element_type=jnp.float32) + b2l  # (c, hw)

        # -- fuse: sigmoid(local * global) * x ---------------------------------
        att = jax.nn.sigmoid(l * gg)                                    # (c, hw) f32
        o_ref[ib] = (att * x).astype(o_ref.dtype)
        return carry

    if bblk == 1:
        one_batch(0, 0)
    else:
        jax.lax.fori_loop(0, bblk, one_batch, 0, unroll=True)


def _fold_conv_bn(w, cb, gamma, beta, mean, var, eps):
    """Fold eval-mode BatchNorm into a 1x1 conv: y = (scale*W) @ x + folded_bias."""
    scale = gamma / jnp.sqrt(var + eps)                                 # (out,)
    return w * scale[:, None], scale * (cb - mean) + beta


def _pick_batch_block(b, per_batch_bytes, target_bytes=2 << 20):
    """Largest divisor of b whose block is <= target bytes; keep >=2 grid steps."""
    blk = int(max(1, min(b, target_bytes // max(per_batch_bytes, 1))))
    if b >= 2:
        blk = max(1, min(blk, b // 2))     # >= 2 grid steps for v7x megacore
    while b % blk:
        blk -= 1
    return blk


def ms_cam(x, local_p, global_p, *, eps=1e-5):
    """x: (b, c, h, w); local_p/global_p: dicts of conv + BN params (see _init_branch)."""
    b, c, h, wd = x.shape
    hw = h * wd
    hw_pad = ((hw + 127) // 128) * 128      # lane-dense loads/stores

    w1l, b1l = _fold_conv_bn(local_p["w1"], local_p["cb1"], local_p["g1"],
                             local_p["b1"], local_p["m1"], local_p["v1"], eps)
    w2l, b2l = _fold_conv_bn(local_p["w2"], local_p["cb2"], local_p["g2"],
                             local_p["b2"], local_p["m2"], local_p["v2"], eps)
    w1g, b1g = _fold_conv_bn(global_p["w1"], global_p["cb1"], global_p["g1"],
                             global_p["b1"], global_p["m1"], global_p["v1"], eps)
    w2g, b2g = _fold_conv_bn(global_p["w2"], global_p["cb2"], global_p["g2"],
                             global_p["b2"], global_p["m2"], global_p["v2"], eps)
    mid = w1l.shape[0]

    # Stack the two first-layer convs; zero-pad the local second-layer weight so
    # the kernel never slices the hw-wide activation on a sub-vreg boundary.
    w1 = jnp.concatenate([w1l, w1g], axis=0)                        # (2*mid, c)
    b1 = jnp.concatenate([b1l, b1g], axis=0).reshape(2 * mid, 1)    # (2*mid, 1)
    w2l_pad = jnp.concatenate([w2l, jnp.zeros_like(w2l)], axis=1)   # (c, 2*mid)

    xr = x.reshape(b, c, hw)
    if hw_pad != hw:
        xr = jnp.pad(xr, ((0, 0), (0, 0), (0, hw_pad - hw)))

    itemsize = jnp.dtype(x.dtype).itemsize
    per_batch_bytes = c * hw_pad * itemsize
    bblk = _pick_batch_block(b, per_batch_bytes)
    grid = (b // bblk,)

    # Scoped-VMEM budget: 2x double-buffered in + 2x out blocks + live f32 temps,
    # with headroom, capped by the physical VMEM of this generation.
    temps_bytes = (4 * mid + 3 * c) * hw_pad * 4
    vmem_needed = 4 * bblk * per_batch_bytes + temps_bytes + (1 << 20)
    try:
        vmem_phys = int(pltpu.get_tpu_info().vmem_capacity_bytes)
    except Exception:
        vmem_phys = 64 << 20                                        # v7x floor
    vmem_limit = int(min(max(2 * vmem_needed, 32 << 20), (vmem_phys * 3) // 4))

    kernel = functools.partial(_ms_cam_kernel, inv_hw=1.0 / float(hw),
                               mid=mid, bblk=bblk)

    out = pl.pallas_call(
        kernel,
        out_shape=jax.ShapeDtypeStruct((b, c, hw_pad), x.dtype),
        grid_spec=pltpu.PrefetchScalarGridSpec(
            num_scalar_prefetch=0,
            grid=grid,
            in_specs=[
                pl.BlockSpec((bblk, c, hw_pad), lambda i: (i, 0, 0)),
                pl.BlockSpec((2 * mid, c), lambda i: (0, 0)),
                pl.BlockSpec((2 * mid, 1), lambda i: (0, 0)),
                pl.BlockSpec((c, 2 * mid), lambda i: (0, 0)),
                pl.BlockSpec((c, 1), lambda i: (0, 0)),
                pl.BlockSpec((c, mid), lambda i: (0, 0)),
                pl.BlockSpec((c, 1), lambda i: (0, 0)),
            ],
            out_specs=pl.BlockSpec((bblk, c, hw_pad), lambda i: (i, 0, 0)),
        ),
        compiler_params=pltpu.CompilerParams(
            dimension_semantics=("parallel",),
            vmem_limit_bytes=vmem_limit,
        ),
    )(
        xr, w1, b1, w2l_pad, b2l.reshape(c, 1), w2g, b2g.reshape(c, 1),
    )
    if hw_pad != hw:
        out = out[:, :, :hw]
    return out.reshape(b, c, h, wd)


def _reference(x, local_p, global_p, eps=1e-5):
    """Pure-JAX mirror of the PyTorch MS_CAM forward (eval-mode BN)."""
    def bn(y, gamma, beta, mean, var):
        inv = gamma / jnp.sqrt(var + eps)
        return (y - mean[None, :, None, None]) * inv[None, :, None, None] \
            + beta[None, :, None, None]

    def conv1x1(y, w, cb):
        return jnp.einsum("bchw,oc->bohw", y, w) + cb[None, :, None, None]

    def branch(y, p):
        y = conv1x1(y, p["w1"], p["cb1"])
        y = bn(y, p["g1"], p["b1"], p["m1"], p["v1"])
        y = jnp.maximum(y, 0.0)
        y = conv1x1(y, p["w2"], p["cb2"])
        y = bn(y, p["g2"], p["b2"], p["m2"], p["v2"])
        return y

    l_x = branch(x, local_p)                                          # (b, c, h, w)
    g_x = branch(jnp.mean(x, axis=(2, 3), keepdims=True), global_p)   # (b, c, 1, 1)
    w = jax.nn.sigmoid(l_x * g_x)
    return w * x


def _init_branch(key, c_in, c_mid):
    ks = jax.random.split(key, 12)
    s = 0.1
    return dict(
        w1=jax.random.normal(ks[0], (c_mid, c_in), jnp.float32) * s,
        cb1=jax.random.normal(ks[1], (c_mid,), jnp.float32) * s,
        g1=1.0 + jax.random.normal(ks[2], (c_mid,), jnp.float32) * s,
        b1=jax.random.normal(ks[3], (c_mid,), jnp.float32) * s,
        m1=jax.random.normal(ks[4], (c_mid,), jnp.float32) * s,
        v1=jnp.abs(jax.random.normal(ks[5], (c_mid,), jnp.float32)) + 0.5,
        w2=jax.random.normal(ks[6], (c_in, c_mid), jnp.float32) * s,
        cb2=jax.random.normal(ks[7], (c_in,), jnp.float32) * s,
        g2=1.0 + jax.random.normal(ks[8], (c_in,), jnp.float32) * s,
        b2=jax.random.normal(ks[9], (c_in,), jnp.float32) * s,
        m2=jax.random.normal(ks[10], (c_in,), jnp.float32) * s,
        v2=jnp.abs(jax.random.normal(ks[11], (c_in,), jnp.float32)) + 0.5,
    )


if __name__ == "__main__":
    # Small shapes consistent with the module (channel must be >= ratio).
    batch, channel, h, w = 2, 64, 16, 16
    ratio = 16
    mid = channel // ratio

    key = jax.random.PRNGKey(0)
    kx, kl, kg = jax.random.split(key, 3)

    x = jax.random.normal(kx, (batch, channel, h, w), dtype=jnp.float32)
    local_p = _init_branch(kl, channel, mid)
    global_p = _init_branch(kg, channel, mid)

    out = jax.block_until_ready(ms_cam(x, local_p, global_p))
    ref = _reference(x, local_p, global_p)
    assert out.shape == (batch, channel, h, w)
    assert jnp.allclose(out, ref, atol=1e-4, rtol=1e-4), "f32 mismatch vs reference"

    # bf16 activations: memory-bound kernel -> ~2x fewer HBM bytes; math stays f32.
    out_bf16 = jax.block_until_ready(ms_cam(x.astype(jnp.bfloat16), local_p, global_p))
    assert out_bf16.dtype == jnp.bfloat16
    assert jnp.allclose(out_bf16.astype(jnp.float32), ref, atol=5e-2, rtol=5e-2), \
        "bf16 mismatch vs reference"

    print("KERNEL_OK")
</pallas_src>

<mosaic_0001>
module attributes {stable_mosaic.version = 11 : i64} {
  func.func @_ms_cam_kernel(%arg0: i32, %arg1: memref<1x64x256xf32, #tpu.memory_space<vmem>>, %arg2: memref<8x64xf32, #tpu.memory_space<vmem>>, %arg3: memref<8x1xf32, #tpu.memory_space<vmem>>, %arg4: memref<64x8xf32, #tpu.memory_space<vmem>>, %arg5: memref<64x1xf32, #tpu.memory_space<vmem>>, %arg6: memref<64x4xf32, #tpu.memory_space<vmem>>, %arg7: memref<64x1xf32, #tpu.memory_space<vmem>>, %arg8: memref<1x64x256xf32, #tpu.memory_space<vmem>>) attributes {dimension_semantics = [#tpu.dimension_semantics<parallel>], iteration_bounds = array<i64: 2>, scalar_prefetch = 0 : i64, scratch_operands = 0 : i64, tpu.core_type = #tpu.core_type<tc>, window_params = [{transform_indices = @transform_0, window_bounds = array<i64: 1, 64, 256>}, {pipeline_mode = #tpu.pipeline_mode<synchronous>, transform_indices = @transform_1, window_bounds = array<i64: 8, 64>}, {pipeline_mode = #tpu.pipeline_mode<synchronous>, transform_indices = @transform_2, window_bounds = array<i64: 8, 1>}, {pipeline_mode = #tpu.pipeline_mode<synchronous>, transform_indices = @transform_3, window_bounds = array<i64: 64, 8>}, {pipeline_mode = #tpu.pipeline_mode<synchronous>, transform_indices = @transform_4, window_bounds = array<i64: 64, 1>}, {pipeline_mode = #tpu.pipeline_mode<synchronous>, transform_indices = @transform_5, window_bounds = array<i64: 64, 4>}, {pipeline_mode = #tpu.pipeline_mode<synchronous>, transform_indices = @transform_6, window_bounds = array<i64: 64, 1>}, {transform_indices = @transform_7, window_bounds = array<i64: 1, 64, 256>}]} {
    %c0 = arith.constant 0 : index
    %c0_0 = arith.constant 0 : index
    %0 = vector.load %arg2[%c0, %c0_0] : memref<8x64xf32, #tpu.memory_space<vmem>>, vector<8x64xf32>
    %c0_1 = arith.constant 0 : index
    %c0_2 = arith.constant 0 : index
    %1 = vector.load %arg3[%c0_1, %c0_2] : memref<8x1xf32, #tpu.memory_space<vmem>>, vector<8x1xf32>
    %c0_3 = arith.constant 0 : index
    %c0_4 = arith.constant 0 : index
    %2 = vector.load %arg4[%c0_3, %c0_4] : memref<64x8xf32, #tpu.memory_space<vmem>>, vector<64x8xf32>
    %c0_5 = arith.constant 0 : index
    %c0_6 = arith.constant 0 : index
    %3 = vector.load %arg5[%c0_5, %c0_6] : memref<64x1xf32, #tpu.memory_space<vmem>>, vector<64x1xf32>
    %c0_7 = arith.constant 0 : index
    %c0_8 = arith.constant 0 : index
    %4 = vector.load %arg6[%c0_7, %c0_8] : memref<64x4xf32, #tpu.memory_space<vmem>>, vector<64x4xf32>
    %c0_9 = arith.constant 0 : index
    %c0_10 = arith.constant 0 : index
    %5 = vector.load %arg7[%c0_9, %c0_10] : memref<64x1xf32, #tpu.memory_space<vmem>>, vector<64x1xf32>
    %c0_11 = arith.constant 0 : index
    %c0_12 = arith.constant 0 : index
    %c0_13 = arith.constant 0 : index
    %6 = vector.load %arg1[%c0_11, %c0_12, %c0_13] : memref<1x64x256xf32, #tpu.memory_space<vmem>>, vector<1x64x256xf32>
    %7 = vector.shape_cast %6 : vector<1x64x256xf32> to vector<64x256xf32>
    %cst = arith.constant dense<0.000000e+00> : vector<8x256xf32>
    %8 = tpu.matmul %0, %7, %cst {dimension_numbers = #tpu.dot_dimension_numbers<[1], [0], [0], [1], [0, 0, 1, 1], [], []>} : vector<8x64xf32>, vector<64x256xf32>, vector<8x256xf32> -> vector<8x256xf32>
    %cst_14 = arith.constant dense<0.000000e+00> : vector<8xf32>
    %9 = vector.multi_reduction <add>, %8, %cst_14 [1] : vector<8x256xf32> to vector<8xf32>
    %10 = vector.shape_cast %9 : vector<8xf32> to vector<8x1xf32>
    %cst_15 = arith.constant 3.906250e-03 : f32
    %11 = vector.broadcast %cst_15 : f32 to vector<8x1xf32>
    %12 = arith.mulf %10, %11 : vector<8x1xf32>
    %13 = vector.extract_strided_slice %12 {offsets = [4, 0], sizes = [4, 1], strides = [1, 1]} : vector<8x1xf32> to vector<4x1xf32>
    %14 = vector.extract_strided_slice %1 {offsets = [4, 0], sizes = [4, 1], strides = [1, 1]} : vector<8x1xf32> to vector<4x1xf32>
    %15 = arith.addf %13, %14 : vector<4x1xf32>
    %cst_16 = arith.constant 0.000000e+00 : f32
    %16 = vector.broadcast %cst_16 : f32 to vector<4x1xf32>
    %17 = arith.maximumf %15, %16 : vector<4x1xf32>
    %18 = vector.extract_strided_slice %4 {offsets = [0, 0], sizes = [64, 1], strides = [1, 1]} : vector<64x4xf32> to vector<64x1xf32>
    %19 = vector.extract_strided_slice %17 {offsets = [0, 0], sizes = [1, 1], strides = [1, 1]} : vector<4x1xf32> to vector<1x1xf32>
    %20 = vector.broadcast %19 : vector<1x1xf32> to vector<64x1xf32>
    %21 = arith.mulf %18, %20 : vector<64x1xf32>
    %22 = arith.addf %5, %21 : vector<64x1xf32>
    %23 = vector.extract_strided_slice %4 {offsets = [0, 1], sizes = [64, 1], strides = [1, 1]} : vector<64x4xf32> to vector<64x1xf32>
    %24 = vector.extract_strided_slice %17 {offsets = [1, 0], sizes = [1, 1], strides = [1, 1]} : vector<4x1xf32> to vector<1x1xf32>
    %25 = vector.broadcast %24 : vector<1x1xf32> to vector<64x1xf32>
    %26 = arith.mulf %23, %25 : vector<64x1xf32>
    %27 = arith.addf %22, %26 : vector<64x1xf32>
    %28 = vector.extract_strided_slice %4 {offsets = [0, 2], sizes = [64, 1], strides = [1, 1]} : vector<64x4xf32> to vector<64x1xf32>
    %29 = vector.extract_strided_slice %17 {offsets = [2, 0], sizes = [1, 1], strides = [1, 1]} : vector<4x1xf32> to vector<1x1xf32>
    %30 = vector.broadcast %29 : vector<1x1xf32> to vector<64x1xf32>
    %31 = arith.mulf %28, %30 : vector<64x1xf32>
    %32 = arith.addf %27, %31 : vector<64x1xf32>
    %33 = vector.extract_strided_slice %4 {offsets = [0, 3], sizes = [64, 1], strides = [1, 1]} : vector<64x4xf32> to vector<64x1xf32>
    %34 = vector.extract_strided_slice %17 {offsets = [3, 0], sizes = [1, 1], strides = [1, 1]} : vector<4x1xf32> to vector<1x1xf32>
    %35 = vector.broadcast %34 : vector<1x1xf32> to vector<64x1xf32>
    %36 = arith.mulf %33, %35 : vector<64x1xf32>
    %37 = arith.addf %32, %36 : vector<64x1xf32>
    %38 = vector.broadcast %1 : vector<8x1xf32> to vector<8x256xf32>
    %39 = arith.addf %8, %38 : vector<8x256xf32>
    %cst_17 = arith.constant 0.000000e+00 : f32
    %40 = vector.broadcast %cst_17 : f32 to vector<8x256xf32>
    %41 = arith.maximumf %39, %40 : vector<8x256xf32>
    %cst_18 = arith.constant dense<0.000000e+00> : vector<64x256xf32>
    %42 = tpu.matmul %2, %41, %cst_18 {dimension_numbers = #tpu.dot_dimension_numbers<[1], [0], [0], [1], [0, 0, 1, 1], [], []>} : vector<64x8xf32>, vector<8x256xf32>, vector<64x256xf32> -> vector<64x256xf32>
    %43 = vector.broadcast %3 : vector<64x1xf32> to vector<64x256xf32>
    %44 = arith.addf %42, %43 : vector<64x256xf32>
    %45 = vector.broadcast %37 : vector<64x1xf32> to vector<64x256xf32>
    %46 = arith.mulf %44, %45 : vector<64x256xf32>
    %47 = arith.negf %46 : vector<64x256xf32>
    %48 = math.exp %47 : vector<64x256xf32>
    %cst_19 = arith.constant 1.000000e+00 : f32
    %49 = vector.broadcast %cst_19 : f32 to vector<64x256xf32>
    %50 = arith.addf %49, %48 : vector<64x256xf32>
    %51 = arith.divf %49, %50 : vector<64x256xf32>
    %52 = arith.mulf %51, %7 : vector<64x256xf32>
    %c0_20 = arith.constant 0 : index
    %c0_21 = arith.constant 0 : index
    %c0_22 = arith.constant 0 : index
    %53 = vector.load %arg8[%c0_20, %c0_21, %c0_22] : memref<1x64x256xf32, #tpu.memory_space<vmem>>, vector<1x64x256xf32>
    %54 = vector.shape_cast %53 : vector<1x64x256xf32> to vector<64x256xf32>
    %55 = vector.shape_cast %52 : vector<64x256xf32> to vector<1x64x256xf32>
    tpu.vector_store %arg8[%c0_20, %c0_21, %c0_22], %55 {strides = array<i32>} : memref<1x64x256xf32, #tpu.memory_space<vmem>>, vector<1x64x256xf32>,
    return
  }
  func.func @transform_0(%arg0: i32) -> (i32, i32, i32) {
    %c0_i32 = arith.constant 0 : i32
    %c0_i32_0 = arith.constant 0 : i32
    %c0_i32_1 = arith.constant 0 : i32
    return %arg0, %c0_i32, %c0_i32_0 : i32, i32, i32
  }
  func.func @transform_1(%arg0: i32) -> (i32, i32) {
    %c0_i32 = arith.constant 0 : i32
    %c0_i32_0 = arith.constant 0 : i32
    %c0_i32_1 = arith.constant 0 : i32
    return %c0_i32, %c0_i32_0 : i32, i32
  }
  func.func @transform_2(%arg0: i32) -> (i32, i32) {
    %c0_i32 = arith.constant 0 : i32
    %c0_i32_0 = arith.constant 0 : i32
    %c0_i32_1 = arith.constant 0 : i32
    return %c0_i32, %c0_i32_0 : i32, i32
  }
  func.func @transform_3(%arg0: i32) -> (i32, i32) {
    %c0_i32 = arith.constant 0 : i32
    %c0_i32_0 = arith.constant 0 : i32
    %c0_i32_1 = arith.constant 0 : i32
    return %c0_i32, %c0_i32_0 : i32, i32
  }
  func.func @transform_4(%arg0: i32) -> (i32, i32) {
    %c0_i32 = arith.constant 0 : i32
    %c0_i32_0 = arith.constant 0 : i32
    %c0_i32_1 = arith.constant 0 : i32
    return %c0_i32, %c0_i32_0 : i32, i32
  }
  func.func @transform_5(%arg0: i32) -> (i32, i32) {
    %c0_i32 = arith.constant 0 : i32
    %c0_i32_0 = arith.constant 0 : i32
    %c0_i32_1 = arith.constant 0 : i32
    return %c0_i32, %c0_i32_0 : i32, i32
  }
  func.func @transform_6(%arg0: i32) -> (i32, i32) {
    %c0_i32 = arith.constant 0 : i32
    %c0_i32_0 = arith.constant 0 : i32
    %c0_i32_1 = arith.constant 0 : i32
    return %c0_i32, %c0_i32_0 : i32, i32
  }
  func.func @transform_7(%arg0: i32) -> (i32, i32, i32) {
    %c0_i32 = arith.constant 0 : i32
    %c0_i32_0 = arith.constant 0 : i32
    %c0_i32_1 = arith.constant 0 : i32
    return %arg0, %c0_i32, %c0_i32_0 : i32, i32, i32
  }
}

</mosaic_0001>

<llo_original>
// kernel: tpu_custom_call.1
$region0: #{tpu_custom_call.1}
  #allocation0 [shape = 'u32[]', space=smem, size = 0x4, offset = 0x4, fixed_abs, tag = 'smem constant byte address 0x4 - core index']
  #allocation1 [shape = 'u32[72,128]{1,0:T(1,128)}', space=vmem, size = 0x9000, scoped, tag = 'internal scratch']
  %s0 = inlined_call_operand.hbm [shape: f32[2,64,256], index: 0, kind: input, shape index: {}]
  %s1 = inlined_call_operand.vmem [shape: f32[8,64], index: 1, kind: input, shape index: {}]
  %s2 = inlined_call_operand.vmem [shape: f32[8,1], index: 2, kind: input, shape index: {}]
  %s3 = inlined_call_operand.vmem [shape: f32[64,8], index: 3, kind: input, shape index: {}]
  %s4 = inlined_call_operand.vmem [shape: f32[64,1], index: 4, kind: input, shape index: {}]
  %s5 = inlined_call_operand.vmem [shape: f32[64,4], index: 5, kind: input, shape index: {}]
  %s6 = inlined_call_operand.vmem [shape: f32[64,1], index: 6, kind: input, shape index: {}]
  %s7 = inlined_call_operand.hbm [shape: f32[2,64,256], index: 7, kind: output, shape index: {}]
  %s8 = sld [smem:[#allocation0]]
  $region65: #{tpu_custom_call.1} parent=0
    _
  %s10 = ssub.s32 1, %s8
  %s11 = scalar_select 0, %s10, %s8
  $region1: #{tpu_custom_call.1} parent=0
    #allocation2 [shape = 'u8[131072]{0}', space=vmem, size = 0x20000, scoped, tag = 'input window, operand 0']
    #allocation3 [shape = 's32[2]{0}', space=sflag, size = 0x8, scoped, tag = 'scoped memory for tpu_custom_call.1']
    #allocation4 [shape = 's32[2]{0}', space=sflag, size = 0x8, scoped, tag = 'scoped memory for tpu_custom_call.1']
    #allocation5 [shape = 'u8[131072]{0}', space=vmem, size = 0x20000, scoped, tag = 'output window, operand 0']
    %12 = vsyncpa [#allocation3], 0
    %s13 = scalar_lea.sflag [#allocation3], 1
    %14 = vsyncpa %s13, 0
    %15 = vsyncpa [#allocation4], 0
    %s16 = scalar_lea.sflag [#allocation4], 1
    %17 = vsyncpa %s16, 0
    loop: start=0, step=1, limit=4
    $region2: #{tpu_custom_call.1} parent=1 // loop_pre_header
      _
    $region3: #{tpu_custom_call.1} parent=1 // loop_header
      %s19 = sphi 0, %s23
      %p20 = scmp.ge.s32.totalorder %s19, 4
      %s29 = sphi 0, %s31
      %s32 = sphi 0, %s29
      %s33 = sphi 0, %s32
      %s49 = sphi 0, %s33
      %s53 = sphi 0, %s53
      %s55 = sphi 0, %s53
      %s56 = sphi 0, %s55
      %s70 = sphi 0, %s56
      %s74 = sphi 0, %s74
      %s76 = sphi 0, %s74
      %s77 = sphi 0, %s76
      %s91 = sphi 0, %s77
      %s95 = sphi 0, %s95
      %s97 = sphi 0, %s95
      %s98 = sphi 0, %s97
      %s112 = sphi 0, %s98
      %s116 = sphi 0, %s116
      %s118 = sphi 0, %s116
      %s119 = sphi 0, %s118
      %s133 = sphi 0, %s119
      %s137 = sphi 0, %s137
      %s139 = sphi 0, %s137
      %s140 = sphi 0, %s139
      %s154 = sphi 0, %s140
      %s158 = sphi 0, %s158
      %s160 = sphi 0, %s158
      %s161 = sphi 0, %s160
      %s175 = sphi 0, %s161
      %s181 = sphi 0, %s183
      %s184 = sphi 0, %s181
      %s185 = sphi 0, %s184
      %s201 = sphi 0, %s185
    $region4: #{tpu_custom_call.1} parent=1 // loop_header_branch
      %22 = sbr.rel (%p20) target = $region8
    $region5: #{tpu_custom_call.1} parent=1 // loop_body
      %s24 = ssub.s32 %s19, 1
      %s25 = ssub.s32 %s19, 2
      %s26 = sadd.s32 %s19, 1
      %s27 = ssub.s32 %s19, %s26
      %p28 = scmp.eq.s32.totalorder %s27, 0
      %s30 = sadd.s32 %s29, 1
      %s31 = scalar_select %p28, %s29, %s30
      %p34 = pneg %p28
      %p35 = scmp.eq.s32.totalorder %s19, 1
      %p36 = por %p34, %p35
      %p37 = scmp.ne.s32.totalorder %s29, %s32
      %p38 = scmp.eq.s32.totalorder %s19, 0
      %p39 = por %p37, %p38
      %p40 = scmp.ne.s32.totalorder %s29, %s32
      %p41 = scmp.eq.s32.totalorder %s24, 1
      %p42 = por %p40, %p41
      %p43 = scmp.ne.s32.totalorder %s32, %s33
      %p44 = scmp.eq.s32.totalorder %s24, 0
      %p45 = por %p43, %p44
      %p46 = scmp.ne.s32.totalorder %s32, %s33
      %p47 = scmp.eq.s32.totalorder %s25, 1
      %p48 = por %p46, %p47
      %p50 = scmp.ne.s32.totalorder %s33, %s49
      %p51 = scmp.eq.s32.totalorder %s25, 0
      %p52 = por %p50, %p51
      %s54 = sadd.s32 %s53, 1
      %p57 = scmp.eq.s32.totalorder %s19, 1
      %p58 = scmp.ne.s32.totalorder %s53, %s55
      %p59 = scmp.eq.s32.totalorder %s19, 0
      %p60 = por %p58, %p59
      %p61 = scmp.ne.s32.totalorder %s53, %s55
      %p62 = scmp.eq.s32.totalorder %s24, 1
      %p63 = por %p61, %p62
      %p64 = scmp.ne.s32.totalorder %s55, %s56
      %p65 = scmp.eq.s32.totalorder %s24, 0
      %p66 = por %p64, %p65
      %p67 = scmp.ne.s32.totalorder %s55, %s56
      %p68 = scmp.eq.s32.totalorder %s25, 1
      %p69 = por %p67, %p68
      %p71 = scmp.ne.s32.totalorder %s56, %s70
      %p72 = scmp.eq.s32.totalorder %s25, 0
      %p73 = por %p71, %p72
      %s75 = sadd.s32 %s74, 1
      %p78 = scmp.eq.s32.totalorder %s19, 1
      %p79 = scmp.ne.s32.totalorder %s74, %s76
      %p80 = scmp.eq.s32.totalorder %s19, 0
      %p81 = por %p79, %p80
      %p82 = scmp.ne.s32.totalorder %s74, %s76
      %p83 = scmp.eq.s32.totalorder %s24, 1
      %p84 = por %p82, %p83
      %p85 = scmp.ne.s32.totalorder %s76, %s77
      %p86 = scmp.eq.s32.totalorder %s24, 0
      %p87 = por %p85, %p86
      %p88 = scmp.ne.s32.totalorder %s76, %s77
      %p89 = scmp.eq.s32.totalorder %s25, 1
      %p90 = por %p88, %p89
      %p92 = scmp.ne.s32.totalorder %s77, %s91
      %p93 = scmp.eq.s32.totalorder %s25, 0
      %p94 = por %p92, %p93
      %s96 = sadd.s32 %s95, 1
      %p99 = scmp.eq.s32.totalorder %s19, 1
      %p100 = scmp.ne.s32.totalorder %s95, %s97
      %p101 = scmp.eq.s32.totalorder %s19, 0
      %p102 = por %p100, %p101
      %p103 = scmp.ne.s32.totalorder %s95, %s97
      %p104 = scmp.eq.s32.totalorder %s24, 1
      %p105 = por %p103, %p104
      %p106 = scmp.ne.s32.totalorder %s97, %s98
      %p107 = scmp.eq.s32.totalorder %s24, 0
      %p108 = por %p106, %p107
      %p109 = scmp.ne.s32.totalorder %s97, %s98
      %p110 = scmp.eq.s32.totalorder %s25, 1
      %p111 = por %p109, %p110
      %p113 = scmp.ne.s32.totalorder %s98, %s112
      %p114 = scmp.eq.s32.totalorder %s25, 0
      %p115 = por %p113, %p114
      %s117 = sadd.s32 %s116, 1
      %p120 = scmp.eq.s32.totalorder %s19, 1
      %p121 = scmp.ne.s32.totalorder %s116, %s118
      %p122 = scmp.eq.s32.totalorder %s19, 0
      %p123 = por %p121, %p122
      %p124 = scmp.ne.s32.totalorder %s116, %s118
      %p125 = scmp.eq.s32.totalorder %s24, 1
      %p126 = por %p124, %p125
      %p127 = scmp.ne.s32.totalorder %s118, %s119
      %p128 = scmp.eq.s32.totalorder %s24, 0
      %p129 = por %p127, %p128
      %p130 = scmp.ne.s32.totalorder %s118, %s119
      %p131 = scmp.eq.s32.totalorder %s25, 1
      %p132 = por %p130, %p131
      %p134 = scmp.ne.s32.totalorder %s119, %s133
      %p135 = scmp.eq.s32.totalorder %s25, 0
      %p136 = por %p134, %p135
      %s138 = sadd.s32 %s137, 1
      %p141 = scmp.eq.s32.totalorder %s19, 1
      %p142 = scmp.ne.s32.totalorder %s137, %s139
      %p143 = scmp.eq.s32.totalorder %s19, 0
      %p144 = por %p142, %p143
      %p145 = scmp.ne.s32.totalorder %s137, %s139
      %p146 = scmp.eq.s32.totalorder %s24, 1
      %p147 = por %p145, %p146
      %p148 = scmp.ne.s32.totalorder %s139, %s140
      %p149 = scmp.eq.s32.totalorder %s24, 0
      %p150 = por %p148, %p149
      %p151 = scmp.ne.s32.totalorder %s139, %s140
      %p152 = scmp.eq.s32.totalorder %s25, 1
      %p153 = por %p151, %p152
      %p155 = scmp.ne.s32.totalorder %s140, %s154
      %p156 = scmp.eq.s32.totalorder %s25, 0
      %p157 = por %p155, %p156
      %s159 = sadd.s32 %s158, 1
      %p162 = scmp.eq.s32.totalorder %s19, 1
      %p163 = scmp.ne.s32.totalorder %s158, %s160
      %p164 = scmp.eq.s32.totalorder %s19, 0
      %p165 = por %p163, %p164
      %p166 = scmp.ne.s32.totalorder %s158, %s160
      %p167 = scmp.eq.s32.totalorder %s24, 1
      %p168 = por %p166, %p167
      %p169 = scmp.ne.s32.totalorder %s160, %s161
      %p170 = scmp.eq.s32.totalorder %s24, 0
      %p171 = por %p169, %p170
      %p172 = scmp.ne.s32.totalorder %s160, %s161
      %p173 = scmp.eq.s32.totalorder %s25, 1
      %p174 = por %p172, %p173
      %p176 = scmp.ne.s32.totalorder %s161, %s175
      %p177 = scmp.eq.s32.totalorder %s25, 0
      %p178 = por %p176, %p177
      %s179 = ssub.s32 %s19, %s26
      %p180 = scmp.eq.s32.totalorder %s179, 0
      %s182 = sadd.s32 %s181, 1
      %s183 = scalar_select %p180, %s181, %s182
      %p186 = pneg %p180
      %p187 = scmp.eq.s32.totalorder %s19, 1
      %p188 = por %p186, %p187
      %p189 = scmp.ne.s32.totalorder %s181, %s184
      %p190 = scmp.eq.s32.totalorder %s19, 0
      %p191 = por %p189, %p190
      %p192 = scmp.ne.s32.totalorder %s181, %s184
      %p193 = scmp.eq.s32.totalorder %s24, 1
      %p194 = por %p192, %p193
      %p195 = scmp.ne.s32.totalorder %s184, %s185
      %p196 = scmp.eq.s32.totalorder %s24, 0
      %p197 = por %p195, %p196
      %p198 = scmp.ne.s32.totalorder %s184, %s185
      %p199 = scmp.eq.s32.totalorder %s25, 1
      %p200 = por %p198, %p199
      %p202 = scmp.ne.s32.totalorder %s185, %s201
      %p203 = scmp.eq.s32.totalorder %s25, 0
      %p204 = por %p202, %p203
      %p205 = scmp.le.s32.totalorder 1, %s19
      %p206 = scmp.lt.s32.totalorder %s19, 3
      %p207 = pnand %p205, %p206
      %p208 = pneg %p207
      // Predicated region
      $region9: #{tpu_custom_call.1} parent=5 // pred_check
        _
      $region10: #{tpu_custom_call.1} parent=5 // pred_check_branch
        %210 = sbr.rel (%p207) target = $region12
      $region11: #{tpu_custom_call.1} parent=5 // pred_region
        %s211 = ssub.s32 %s19, 1
        // Predicated region
        $region13: #{tpu_custom_call.1} parent=11 // pred_check
          %p212 = pneg %p66
        $region14: #{tpu_custom_call.1} parent=11 // pred_check_branch
          %214 = sbr.rel (%p212) target = $region16
        $region15: #{tpu_custom_call.1} parent=11 // pred_region
          _
        $region16: #{tpu_custom_call.1} parent=11 // pred_fallthru
          _
        // Predicated region
        $region17: #{tpu_custom_call.1} parent=11 // pred_check
          %p215 = pneg %p87
        $region18: #{tpu_custom_call.1} parent=11 // pred_check_branch
          %217 = sbr.rel (%p215) target = $region20
        $region19: #{tpu_custom_call.1} parent=11 // pred_region
          _
        $region20: #{tpu_custom_call.1} parent=11 // pred_fallthru
          _
        // Predicated region
        $region21: #{tpu_custom_call.1} parent=11 // pred_check
          %p218 = pneg %p108
        $region22: #{tpu_custom_call.1} parent=11 // pred_check_branch
          %220 = sbr.rel (%p218) target = $region24
        $region23: #{tpu_custom_call.1} parent=11 // pred_region
          _
        $region24: #{tpu_custom_call.1} parent=11 // pred_fallthru
          _
        // Predicated region
        $region25: #{tpu_custom_call.1} parent=11 // pred_check
          %p221 = pneg %p129
        $region26: #{tpu_custom_call.1} parent=11 // pred_check_branch
          %223 = sbr.rel (%p221) target = $region28
        $region27: #{tpu_custom_call.1} parent=11 // pred_region
          _
        $region28: #{tpu_custom_call.1} parent=11 // pred_fallthru
          _
        // Predicated region
        $region29: #{tpu_custom_call.1} parent=11 // pred_check
          %p224 = pneg %p150
        $region30: #{tpu_custom_call.1} parent=11 // pred_check_branch
          %226 = sbr.rel (%p224) target = $region32
        $region31: #{tpu_custom_call.1} parent=11 // pred_region
          _
        $region32: #{tpu_custom_call.1} parent=11 // pred_fallthru
          _
        // Predicated region
        $region33: #{tpu_custom_call.1} parent=11 // pred_check
          %p227 = pneg %p171
        $region34: #{tpu_custom_call.1} parent=11 // pred_check_branch
          %229 = sbr.rel (%p227) target = $region36
        $region35: #{tpu_custom_call.1} parent=11 // pred_region
          _
        $region36: #{tpu_custom_call.1} parent=11 // pred_fallthru
          _
      $region12: #{tpu_custom_call.1} parent=5 // pred_fallthru
        _
      %p230 = scmp.lt.s32.totalorder %s19, 2
      // Predicated region
      $region37: #{tpu_custom_call.1} parent=5 // pred_check
        %p231 = pneg %p230
      $region38: #{tpu_custom_call.1} parent=5 // pred_check_branch
        %233 = sbr.rel (%p231) target = $region40
      $region39: #{tpu_custom_call.1} parent=5 // pred_region
        // Predicated region
        $region41: #{tpu_custom_call.1} parent=39 // pred_check
          %p234 = pneg %p39
        $region42: #{tpu_custom_call.1} parent=39 // pred_check_branch
          %236 = sbr.rel (%p234) target = $region44
        $region43: #{tpu_custom_call.1} parent=39 // pred_region
          %s237 = sand.u32 %s29, 1
          %s238 = scalar_lea.sflag [#allocation3], %s237
          %s239 = sand.u32 %s29, 1
          %s240 = smul.addr %s239, 128
          %s241 = scalar_lea.vmem [#allocation2], %s240
          %243 = vsyncadd %s238, 0
          %s244 = smul.addr %s19, 16
          %s245 = smul.addr %s244, 8
          %s246 = scalar_lea.hbm %s0, %s245
          %s247 = sshll.u32 %s246, 4
          %s248 = int_to_ptr.hbm [resolvable:$true] %s247
          %s249 = sshll.u32 %s241, 4
          %s250 = int_to_ptr.vmem [resolvable:$true] %s249
          %255 = dma.hbm_to_vmem [thread:$0]  %s248, 2048, %s250, %s238, 256, 256, 16
        $region44: #{tpu_custom_call.1} parent=39 // pred_fallthru
          _
      $region40: #{tpu_custom_call.1} parent=5 // pred_fallthru
        _
      %p256 = scmp.le.s32.totalorder 1, %s19
      %p257 = scmp.lt.s32.totalorder %s19, 3
      %p258 = pnand %p256, %p257
      %p259 = pneg %p258
      // Predicated region
      $region45: #{tpu_custom_call.1} parent=5 // pred_check
        _
      $region46: #{tpu_custom_call.1} parent=5 // pred_check_branch
        %261 = sbr.rel (%p258) target = $region48
      $region47: #{tpu_custom_call.1} parent=5 // pred_region
        %s262 = ssub.s32 %s19, 1
        %s263 = sand.u32 %s32, 1
        %s264 = scalar_lea.sflag [#allocation3], %s263
        %s265 = sand.u32 %s32, 1
        %s266 = smul.addr %s265, 128
        %s267 = scalar_lea.vmem [#allocation2], %s266
        // Predicated region
        $region49: #{tpu_custom_call.1} parent=47 // pred_check
          %p268 = pneg %p45
        $region50: #{tpu_custom_call.1} parent=47 // pred_check_branch
          %270 = sbr.rel (%p268) target = $region52
        $region51: #{tpu_custom_call.1} parent=47 // pred_region
          %272 = dma.done %s264, 2048
        $region52: #{tpu_custom_call.1} parent=47 // pred_fallthru
          _
        %s273 = sand.u32 %s32, 1
        %s274 = scalar_lea.sflag [#allocation3], %s273
        %s275 = sand.u32 %s32, 1
        %s276 = smul.addr %s275, 128
        %s277 = scalar_lea.vmem [#allocation2], %s276
        %p278 = pneg %p45
        %p279 = pneg %p42
        %p280 = pneg %p66
        %p281 = pneg %p63
        %p282 = pneg %p87
        %p283 = pneg %p84
        %p284 = pneg %p108
        %p285 = pneg %p105
        %p286 = pneg %p129
        %p287 = pneg %p126
        %p288 = pneg %p150
        %p289 = pneg %p147
        %p290 = pneg %p171
        %p291 = pneg %p168
        %p292 = pneg %p197
        %p293 = pneg %p194
        %s294 = sand.u32 %s184, 1
        %s295 = scalar_lea.sflag [#allocation4], %s294
        %s296 = sand.u32 %s184, 1
        %s297 = smul.addr %s296, 128
        %s298 = scalar_lea.vmem [#allocation5], %s297
        %v299 = vld [vmem:[%s1] sm:$0xff]
        %v300 = vld [vmem:[%s2] sm:$0xff]
        %v301 = vld [vmem:[%s3] sm:$0xff]
        %v302 = vld [vmem:[%s3 + $0x8] sm:$0xff]
        %v303 = vld [vmem:[%s3 + $0x10] sm:$0xff]
        %v304 = vld [vmem:[%s3 + $0x18] sm:$0xff]
        %v305 = vld [vmem:[%s3 + $0x20] sm:$0xff]
        %v306 = vld [vmem:[%s3 + $0x28] sm:$0xff]
        %v307 = vld [vmem:[%s3 + $0x30] sm:$0xff]
        %v308 = vld [vmem:[%s3 + $0x38] sm:$0xff]
        %v309 = vld [vmem:[%s4] sm:$0xff]
        %v310 = vld [vmem:[%s4 + $0x8] sm:$0xff]
        %v311 = vld [vmem:[%s4 + $0x10] sm:$0xff]
        %v312 = vld [vmem:[%s4 + $0x18] sm:$0xff]
        %v313 = vld [vmem:[%s4 + $0x20] sm:$0xff]
        %v314 = vld [vmem:[%s4 + $0x28] sm:$0xff]
        %v315 = vld [vmem:[%s4 + $0x30] sm:$0xff]
        %v316 = vld [vmem:[%s4 + $0x38] sm:$0xff]
        %v317 = vld [vmem:[%s5] sm:$0xff]
        %v318 = vld [vmem:[%s5 + $0x8] sm:$0xff]
        %v319 = vld [vmem:[%s5 + $0x10] sm:$0xff]
        %v320 = vld [vmem:[%s5 + $0x18] sm:$0xff]
        %v321 = vld [vmem:[%s5 + $0x20] sm:$0xff]
        %v322 = vld [vmem:[%s5 + $0x28] sm:$0xff]
        %v323 = vld [vmem:[%s5 + $0x30] sm:$0xff]
        %v324 = vld [vmem:[%s5 + $0x38] sm:$0xff]
        %v325 = vld [vmem:[%s6] sm:$0xff]
        %v326 = vld [vmem:[%s6 + $0x8] sm:$0xff]
        %v327 = vld [vmem:[%s6 + $0x10] sm:$0xff]
        %v328 = vld [vmem:[%s6 + $0x18] sm:$0xff]
        %v329 = vld [vmem:[%s6 + $0x20] sm:$0xff]
        %v330 = vld [vmem:[%s6 + $0x28] sm:$0xff]
        %v331 = vld [vmem:[%s6 + $0x30] sm:$0xff]
        %v332 = vld [vmem:[%s6 + $0x38] sm:$0xff]
        %v333 = vld [vmem:[%s267] sm:$0xff]
        %v334 = vld [vmem:[%s267 + $0x8] sm:$0xff]
        %v335 = vld [vmem:[%s267 + $0x10] sm:$0xff]
        %v336 = vld [vmem:[%s267 + $0x18] sm:$0xff]
        %v337 = vld [vmem:[%s267 + $0x20] sm:$0xff]
        %v338 = vld [vmem:[%s267 + $0x28] sm:$0xff]
        %v339 = vld [vmem:[%s267 + $0x30] sm:$0xff]
        %v340 = vld [vmem:[%s267 + $0x38] sm:$0xff]
        %v341 = vld [vmem:[%s267 + $0x40] sm:$0xff]
        %v342 = vld [vmem:[%s267 + $0x48] sm:$0xff]
        %v343 = vld [vmem:[%s267 + $0x50] sm:$0xff]
        %v344 = vld [vmem:[%s267 + $0x58] sm:$0xff]
        %v345 = vld [vmem:[%s267 + $0x60] sm:$0xff]
        %v346 = vld [vmem:[%s267 + $0x68] sm:$0xff]
        %v347 = vld [vmem:[%s267 + $0x70] sm:$0xff]
        %v348 = vld [vmem:[%s267 + $0x78] sm:$0xff]
        %vm349 = vcmask 523264
        %v351 = vsel %vm349, %v299, 0
        %353 = vmatpush.msra.mxu0 0.0
        %354 = vmatpush.msra.mxu0 0.0
        %355 = vmatpush.msra.mxu0 0.0
        %356 = vmatpush.msra.mxu0 0.0
        %357 = vmatpush.msra.mxu0 0.0
        %358 = vmatpush.msra.mxu0 0.0
        %359 = vmatpush.msra.mxu0 0.0
        %360 = vmatpush.msra.mxu0 0.0
        %361 = vmatpush.msra.mxu0 %v347
        %362 = vmatpush.msra.mxu0 %v345
        %363 = vmatpush.msra.mxu0 %v343
        %364 = vmatpush.msra.mxu0 %v341
        %365 = vmatpush.msra.mxu0 %v339
        %366 = vmatpush.msra.mxu0 %v337
        %367 = vmatpush.msra.mxu0 %v335
        %368 = vmatpush.msra.mxu0 %v333
        %369 = vmatmul.f32.gmra.mxu0 %v351
        %v370 = vpop.f32.mrf.mxu0
        %v371 = vadd.f32 0.0, %v370
        %372 = vdwg.mxu0
        %373 = vmatpush.msra.mxu0 0.0
        %374 = vmatpush.msra.mxu0 0.0
        %375 = vmatpush.msra.mxu0 0.0
        %376 = vmatpush.msra.mxu0 0.0
        %377 = vmatpush.msra.mxu0 0.0
        %378 = vmatpush.msra.mxu0 0.0
        %379 = vmatpush.msra.mxu0 0.0
        %380 = vmatpush.msra.mxu0 0.0
        %381 = vmatpush.msra.mxu0 %v348
        %382 = vmatpush.msra.mxu0 %v346
        %383 = vmatpush.msra.mxu0 %v344
        %384 = vmatpush.msra.mxu0 %v342
        %385 = vmatpush.msra.mxu0 %v340
        %386 = vmatpush.msra.mxu0 %v338
        %387 = vmatpush.msra.mxu0 %v336
        %388 = vmatpush.msra.mxu0 %v334
        %389 = vmatmul.f32.gmra.mxu0 %v351
        %v390 = vpop.f32.mrf.mxu0
        %v391 = vadd.f32 0.0, %v390
        %392 = vdwg.mxu0
        %v393 = vadd.f32 %v371, %v391
        %394 = vadd.xlane.f32.xlu0 %v393
        %v395 = vpop.xlane.xlu0 %394
        %v396 = vmul.f32 %v395, 0.00390625
        %v397 = vadd.f32 %v396, %v300
        %v398 = vmax.f32 %v397, 0.0
        %v399 = vperm.slane %v398, 4
        %v400 = vmul.f32 %v317, %v399
        %v401 = vmul.f32 %v318, %v399
        %v402 = vmul.f32 %v319, %v399
        %v403 = vmul.f32 %v320, %v399
        %v404 = vmul.f32 %v321, %v399
        %v405 = vmul.f32 %v322, %v399
        %v406 = vmul.f32 %v323, %v399
        %v407 = vmul.f32 %v324, %v399
        %v408 = vadd.f32 %v325, %v400
        %v409 = vadd.f32 %v326, %v401
        %v410 = vadd.f32 %v327, %v402
        %v411 = vadd.f32 %v328, %v403
        %v412 = vadd.f32 %v329, %v404
        %v413 = vadd.f32 %v330, %v405
        %v414 = vadd.f32 %v331, %v406
        %v415 = vadd.f32 %v332, %v407
        %v416 = vperm.slane %v398, 5
        %418 = vrot.lane.b32.xlu0 %v416, 1
        %v419 = vpop.permute.xlu0 %418
        %v421 = vmul.f32 %v317, %v419
        %v422 = vmul.f32 %v318, %v419
        %v423 = vmul.f32 %v319, %v419
        %v424 = vmul.f32 %v320, %v419
        %v425 = vmul.f32 %v321, %v419
        %v426 = vmul.f32 %v322, %v419
        %v427 = vmul.f32 %v323, %v419
        %v428 = vmul.f32 %v324, %v419
        %437 = vrot.lane.b32.xlu0 %v421, 127
        %v438 = vpop.permute.xlu0 %437
        %439 = vrot.lane.b32.xlu0 %v422, 127
        %v440 = vpop.permute.xlu0 %439
        %441 = vrot.lane.b32.xlu0 %v423, 127
        %v442 = vpop.permute.xlu0 %441
        %443 = vrot.lane.b32.xlu0 %v424, 127
        %v444 = vpop.permute.xlu0 %443
        %445 = vrot.lane.b32.xlu0 %v425, 127
        %v446 = vpop.permute.xlu0 %445
        %447 = vrot.lane.b32.xlu0 %v426, 127
        %v448 = vpop.permute.xlu0 %447
        %449 = vrot.lane.b32.xlu0 %v427, 127
        %v450 = vpop.permute.xlu0 %449
        %451 = vrot.lane.b32.xlu0 %v428, 127
        %v452 = vpop.permute.xlu0 %451
        %v461 = vadd.f32 %v408, %v438
        %v462 = vadd.f32 %v409, %v440
        %v463 = vadd.f32 %v410, %v442
        %v464 = vadd.f32 %v411, %v444
        %v465 = vadd.f32 %v412, %v446
        %v466 = vadd.f32 %v413, %v448
        %v467 = vadd.f32 %v414, %v450
        %v468 = vadd.f32 %v415, %v452
        %v469 = vperm.slane %v398, 6
        %471 = vrot.lane.b32.xlu0 %v469, 2
        %v472 = vpop.permute.xlu0 %471
        %v474 = vmul.f32 %v317, %v472
        %v475 = vmul.f32 %v318, %v472
        %v476 = vmul.f32 %v319, %v472
        %v477 = vmul.f32 %v320, %v472
        %v478 = vmul.f32 %v321, %v472
        %v479 = vmul.f32 %v322, %v472
        %v480 = vmul.f32 %v323, %v472
        %v481 = vmul.f32 %v324, %v472
        %490 = vrot.lane.b32.xlu0 %v474, 126
        %v491 = vpop.permute.xlu0 %490
        %492 = vrot.lane.b32.xlu0 %v475, 126
        %v493 = vpop.permute.xlu0 %492
        %494 = vrot.lane.b32.xlu0 %v476, 126
        %v495 = vpop.permute.xlu0 %494
        %496 = vrot.lane.b32.xlu0 %v477, 126
        %v497 = vpop.permute.xlu0 %496
        %498 = vrot.lane.b32.xlu0 %v478, 126
        %v499 = vpop.permute.xlu0 %498
        %500 = vrot.lane.b32.xlu0 %v479, 126
        %v501 = vpop.permute.xlu0 %500
        %502 = vrot.lane.b32.xlu0 %v480, 126
        %v503 = vpop.permute.xlu0 %502
        %504 = vrot.lane.b32.xlu0 %v481, 126
        %v505 = vpop.permute.xlu0 %504
        %v514 = vadd.f32 %v461, %v491
        %v515 = vadd.f32 %v462, %v493
        %v516 = vadd.f32 %v463, %v495
        %v517 = vadd.f32 %v464, %v497
        %v518 = vadd.f32 %v465, %v499
        %v519 = vadd.f32 %v466, %v501
        %v520 = vadd.f32 %v467, %v503
        %v521 = vadd.f32 %v468, %v505
        %v522 = vperm.slane %v398, 7
        %524 = vrot.lane.b32.xlu0 %v522, 3
        %v525 = vpop.permute.xlu0 %524
        %v527 = vmul.f32 %v317, %v525
        %v528 = vmul.f32 %v318, %v525
        %v529 = vmul.f32 %v319, %v525
        %v530 = vmul.f32 %v320, %v525
        %v531 = vmul.f32 %v321, %v525
        %v532 = vmul.f32 %v322, %v525
        %v533 = vmul.f32 %v323, %v525
        %v534 = vmul.f32 %v324, %v525
        %543 = vrot.lane.b32.xlu0 %v527, 125
        %v544 = vpop.permute.xlu0 %543
        %545 = vrot.lane.b32.xlu0 %v528, 125
        %v546 = vpop.permute.xlu0 %545
        %547 = vrot.lane.b32.xlu0 %v529, 125
        %v548 = vpop.permute.xlu0 %547
        %549 = vrot.lane.b32.xlu0 %v530, 125
        %v550 = vpop.permute.xlu0 %549
        %551 = vrot.lane.b32.xlu0 %v531, 125
        %v552 = vpop.permute.xlu0 %551
        %553 = vrot.lane.b32.xlu0 %v532, 125
        %v554 = vpop.permute.xlu0 %553
        %555 = vrot.lane.b32.xlu0 %v533, 125
        %v556 = vpop.permute.xlu0 %555
        %557 = vrot.lane.b32.xlu0 %v534, 125
        %v558 = vpop.permute.xlu0 %557
        %v567 = vadd.f32 %v514, %v544
        %v568 = vadd.f32 %v515, %v546
        %v569 = vadd.f32 %v516, %v548
        %v570 = vadd.f32 %v517, %v550
        %v571 = vadd.f32 %v518, %v552
        %v572 = vadd.f32 %v519, %v554
        %v573 = vadd.f32 %v520, %v556
        %v574 = vadd.f32 %v521, %v558
        %576 = vset.pattern.permute.xlu0 0
        %577 = vperm.xlu0 %576, %v300
        %v578 = vpop.permute.xlu0 %577
        %v580 = vadd.f32 %v371, %v578
        %v581 = vadd.f32 %v391, %v578
        %v582 = vmax.f32 %v580, 0.0
        %v583 = vmax.f32 %v581, 0.0
        %585 = vset.pattern.permute.xlu0 0
        %586 = vperm.xlu0 %585, %v309
        %v587 = vpop.permute.xlu0 %586
        %590 = vset.pattern.permute.xlu0 0
        %591 = vperm.xlu0 %590, %v310
        %v592 = vpop.permute.xlu0 %591
        %595 = vset.pattern.permute.xlu0 0
        %596 = vperm.xlu0 %595, %v311
        %v597 = vpop.permute.xlu0 %596
        %600 = vset.pattern.permute.xlu0 0
        %601 = vperm.xlu0 %600, %v312
        %v602 = vpop.permute.xlu0 %601
        %605 = vset.pattern.permute.xlu0 0
        %606 = vperm.xlu0 %605, %v313
        %v607 = vpop.permute.xlu0 %606
        %610 = vset.pattern.permute.xlu0 0
        %611 = vperm.xlu0 %610, %v314
        %v612 = vpop.permute.xlu0 %611
        %615 = vset.pattern.permute.xlu0 0
        %616 = vperm.xlu0 %615, %v315
        %v617 = vpop.permute.xlu0 %616
        %620 = vset.pattern.permute.xlu0 0
        %621 = vperm.xlu0 %620, %v316
        %v622 = vpop.permute.xlu0 %621
        %vm624 = vcmask 64512
        %v626 = vsel %vm624, %v301, 0
        %v629 = vsel %vm624, %v302, 0
        %v632 = vsel %vm624, %v303, 0
        %v635 = vsel %vm624, %v304, 0
        %v638 = vsel %vm624, %v305, 0
        %v641 = vsel %vm624, %v306, 0
        %v644 = vsel %vm624, %v307, 0
        %v647 = vsel %vm624, %v308, 0
        %649 = vmatpush.msra.mxu0 0.0
        %650 = vmatpush.msra.mxu0 0.0
        %651 = vmatpush.msra.mxu0 0.0
        %652 = vmatpush.msra.mxu0 0.0
        %653 = vmatpush.msra.mxu0 0.0
        %654 = vmatpush.msra.mxu0 0.0
        %655 = vmatpush.msra.mxu0 0.0
        %656 = vmatpush.msra.mxu0 0.0
        %657 = vmatpush.msra.mxu0 0.0
        %658 = vmatpush.msra.mxu0 0.0
        %659 = vmatpush.msra.mxu0 0.0
        %660 = vmatpush.msra.mxu0 0.0
        %661 = vmatpush.msra.mxu0 0.0
        %662 = vmatpush.msra.mxu0 0.0
        %663 = vmatpush.msra.mxu0 0.0
        %664 = vmatpush.msra.mxu0 %v582
        %665 = vmatmul.f32.gmra.mxu0 %v626
        %v666 = vpop.f32.mrf.mxu0
        %v667 = vadd.f32 %v587, %v666
        %668 = vmatmul.f32.gmra.mxu0 %v629
        %v669 = vpop.f32.mrf.mxu0
        %v670 = vadd.f32 %v592, %v669
        %671 = vmatmul.f32.gmra.mxu0 %v632
        %v672 = vpop.f32.mrf.mxu0
        %v673 = vadd.f32 %v597, %v672
        %674 = vmatmul.f32.gmra.mxu0 %v635
        %v675 = vpop.f32.mrf.mxu0
        %v676 = vadd.f32 %v602, %v675
        %677 = vmatmul.f32.gmra.mxu0 %v638
        %v678 = vpop.f32.mrf.mxu0
        %v679 = vadd.f32 %v607, %v678
        %680 = vmatmul.f32.gmra.mxu0 %v641
        %v681 = vpop.f32.mrf.mxu0
        %v682 = vadd.f32 %v612, %v681
        %683 = vmatmul.f32.gmra.mxu0 %v644
        %v684 = vpop.f32.mrf.mxu0
        %v685 = vadd.f32 %v617, %v684
        %686 = vmatmul.f32.gmra.mxu0 %v647
        %v687 = vpop.f32.mrf.mxu0
        %v688 = vadd.f32 %v622, %v687
        %689 = vdwg.mxu0
        %690 = vmatpush.msra.mxu0 0.0
        %691 = vmatpush.msra.mxu0 0.0
        %692 = vmatpush.msra.mxu0 0.0
        %693 = vmatpush.msra.mxu0 0.0
        %694 = vmatpush.msra.mxu0 0.0
        %695 = vmatpush.msra.mxu0 0.0
        %696 = vmatpush.msra.mxu0 0.0
        %697 = vmatpush.msra.mxu0 0.0
        %698 = vmatpush.msra.mxu0 0.0
        %699 = vmatpush.msra.mxu0 0.0
        %700 = vmatpush.msra.mxu0 0.0
        %701 = vmatpush.msra.mxu0 0.0
        %702 = vmatpush.msra.mxu0 0.0
        %703 = vmatpush.msra.mxu0 0.0
        %704 = vmatpush.msra.mxu0 0.0
        %705 = vmatpush.msra.mxu0 %v583
        %706 = vmatmul.f32.gmra.mxu0 %v626
        %v707 = vpop.f32.mrf.mxu0
        %v708 = vadd.f32 %v587, %v707
        %709 = vmatmul.f32.gmra.mxu0 %v629
        %v710 = vpop.f32.mrf.mxu0
        %v711 = vadd.f32 %v592, %v710
        %712 = vmatmul.f32.gmra.mxu0 %v632
        %v713 = vpop.f32.mrf.mxu0
        %v714 = vadd.f32 %v597, %v713
        %715 = vmatmul.f32.gmra.mxu0 %v635
        %v716 = vpop.f32.mrf.mxu0
        %v717 = vadd.f32 %v602, %v716
        %718 = vmatmul.f32.gmra.mxu0 %v638
        %v719 = vpop.f32.mrf.mxu0
        %v720 = vadd.f32 %v607, %v719
        %721 = vmatmul.f32.gmra.mxu0 %v641
        %v722 = vpop.f32.mrf.mxu0
        %v723 = vadd.f32 %v612, %v722
        %724 = vmatmul.f32.gmra.mxu0 %v644
        %v725 = vpop.f32.mrf.mxu0
        %v726 = vadd.f32 %v617, %v725
        %727 = vmatmul.f32.gmra.mxu0 %v647
        %v728 = vpop.f32.mrf.mxu0
        %v729 = vadd.f32 %v622, %v728
        %730 = vdwg.mxu0
        %732 = vset.pattern.permute.xlu0 0
        %733 = vperm.xlu0 %732, %v567
        %v734 = vpop.permute.xlu0 %733
        %737 = vset.pattern.permute.xlu0 0
        %738 = vperm.xlu0 %737, %v568
        %v739 = vpop.permute.xlu0 %738
        %742 = vset.pattern.permute.xlu0 0
        %743 = vperm.xlu0 %742, %v569
        %v744 = vpop.permute.xlu0 %743
        %747 = vset.pattern.permute.xlu0 0
        %748 = vperm.xlu0 %747, %v570
        %v749 = vpop.permute.xlu0 %748
        %752 = vset.pattern.permute.xlu0 0
        %753 = vperm.xlu0 %752, %v571
        %v754 = vpop.permute.xlu0 %753
        %757 = vset.pattern.permute.xlu0 0
        %758 = vperm.xlu0 %757, %v572
        %v759 = vpop.permute.xlu0 %758
        %762 = vset.pattern.permute.xlu0 0
        %763 = vperm.xlu0 %762, %v573
        %v764 = vpop.permute.xlu0 %763
        %767 = vset.pattern.permute.xlu0 0
        %768 = vperm.xlu0 %767, %v574
        %v769 = vpop.permute.xlu0 %768
        %v771 = vmul.f32 %v667, %v734
        %v772 = vmul.f32 %v708, %v734
        %v773 = vmul.f32 %v670, %v739
        %v774 = vmul.f32 %v711, %v739
        %v775 = vmul.f32 %v673, %v744
        %v776 = vmul.f32 %v714, %v744
        %v777 = vmul.f32 %v676, %v749
        %v778 = vmul.f32 %v717, %v749
        %v779 = vmul.f32 %v679, %v754
        %v780 = vmul.f32 %v720, %v754
        %v781 = vmul.f32 %v682, %v759
        %v782 = vmul.f32 %v723, %v759
        %v783 = vmul.f32 %v685, %v764
        %v784 = vmul.f32 %v726, %v764
        %v785 = vmul.f32 %v688, %v769
        %v786 = vmul.f32 %v729, %v769
        %v787 = vxor.u32 %v771, 2147483648
        %v788 = vxor.u32 %v772, 2147483648
        %v789 = vxor.u32 %v773, 2147483648
        %v790 = vxor.u32 %v774, 2147483648
        %v791 = vxor.u32 %v775, 2147483648
        %v792 = vxor.u32 %v776, 2147483648
        %v793 = vxor.u32 %v777, 2147483648
        %v794 = vxor.u32 %v778, 2147483648
        %v795 = vxor.u32 %v779, 2147483648
        %v796 = vxor.u32 %v780, 2147483648
        %v797 = vxor.u32 %v781, 2147483648
        %v798 = vxor.u32 %v782, 2147483648
        %v799 = vxor.u32 %v783, 2147483648
        %v800 = vxor.u32 %v784, 2147483648
        %v801 = vxor.u32 %v785, 2147483648
        %v802 = vxor.u32 %v786, 2147483648
        %v803 = vmul.f32 %v787, 1.442695
        %v804 = vpow.pop %v803
        %v805 = vmul.f32 %v788, 1.442695
        %v806 = vpow.pop %v805
        %v807 = vmul.f32 %v789, 1.442695
        %v808 = vpow.pop %v807
        %v809 = vmul.f32 %v790, 1.442695
        %v810 = vpow.pop %v809
        %v811 = vmul.f32 %v791, 1.442695
        %v812 = vpow.pop %v811
        %v813 = vmul.f32 %v792, 1.442695
        %v814 = vpow.pop %v813
        %v815 = vmul.f32 %v793, 1.442695
        %v816 = vpow.pop %v815
        %v817 = vmul.f32 %v794, 1.442695
        %v818 = vpow.pop %v817
        %v819 = vmul.f32 %v795, 1.442695
        %v820 = vpow.pop %v819
        %v821 = vmul.f32 %v796, 1.442695
        %v822 = vpow.pop %v821
        %v823 = vmul.f32 %v797, 1.442695
        %v824 = vpow.pop %v823
        %v825 = vmul.f32 %v798, 1.442695
        %v826 = vpow.pop %v825
        %v827 = vmul.f32 %v799, 1.442695
        %v828 = vpow.pop %v827
        %v829 = vmul.f32 %v800, 1.442695
        %v830 = vpow.pop %v829
        %v831 = vmul.f32 %v801, 1.442695
        %v832 = vpow.pop %v831
        %v833 = vmul.f32 %v802, 1.442695
        %v834 = vpow.pop %v833
        %v835 = vadd.f32 %v804, 1.0
        %v836 = vadd.f32 %v806, 1.0
        %v837 = vadd.f32 %v808, 1.0
        %v838 = vadd.f32 %v810, 1.0
        %v839 = vadd.f32 %v812, 1.0
        %v840 = vadd.f32 %v814, 1.0
        %v841 = vadd.f32 %v816, 1.0
        %v842 = vadd.f32 %v818, 1.0
        %v843 = vadd.f32 %v820, 1.0
        %v844 = vadd.f32 %v822, 1.0
        %v845 = vadd.f32 %v824, 1.0
        %v846 = vadd.f32 %v826, 1.0
        %v847 = vadd.f32 %v828, 1.0
        %v848 = vadd.f32 %v830, 1.0
        %v849 = vadd.f32 %v832, 1.0
        %v850 = vadd.f32 %v834, 1.0
        %v851 = vrcp.pop %v835
        %v852 = vmul.f32 %v835, %v851
        %v853 = vsub.f32 1.0, %v852
        %v854 = vmul.f32 %v851, %v853
        %v855 = vadd.f32 %v851, %v854
        %vm856 = vweird.f32 %v835
        %vm857 = vweird.f32 %v851
        %vm858 = vmor %vm856, %vm857
        %v859 = vsel %vm858, %v851, %v855
        %v860 = vand.u32 2147483647, %v835
        %vm861 = vcmp.eq.f32.partialorder %v860, 8.507059e+37
        %v862 = vand.u32 %v835, 2147483648
        %v863 = vor.u32 1.1754944e-38, %v862
        %v864 = vsel %vm861, %v863, %v859
        %v865 = vmul.f32 1.0, %v864
        %v866 = vrcp.pop %v836
        %v867 = vmul.f32 %v836, %v866
        %v868 = vsub.f32 1.0, %v867
        %v869 = vmul.f32 %v866, %v868
        %v870 = vadd.f32 %v866, %v869
        %vm871 = vweird.f32 %v836
        %vm872 = vweird.f32 %v866
        %vm873 = vmor %vm871, %vm872
        %v874 = vsel %vm873, %v866, %v870
        %v875 = vand.u32 2147483647, %v836
        %vm876 = vcmp.eq.f32.partialorder %v875, 8.507059e+37
        %v877 = vand.u32 %v836, 2147483648
        %v878 = vor.u32 1.1754944e-38, %v877
        %v879 = vsel %vm876, %v878, %v874
        %v880 = vmul.f32 1.0, %v879
        %v881 = vrcp.pop %v837
        %v882 = vmul.f32 %v837, %v881
        %v883 = vsub.f32 1.0, %v882
        %v884 = vmul.f32 %v881, %v883
        %v885 = vadd.f32 %v881, %v884
        %vm886 = vweird.f32 %v837
        %vm887 = vweird.f32 %v881
        %vm888 = vmor %vm886, %vm887
        %v889 = vsel %vm888, %v881, %v885
        %v890 = vand.u32 2147483647, %v837
        %vm891 = vcmp.eq.f32.partialorder %v890, 8.507059e+37
        %v892 = vand.u32 %v837, 2147483648
        %v893 = vor.u32 1.1754944e-38, %v892
        %v894 = vsel %vm891, %v893, %v889
        %v895 = vmul.f32 1.0, %v894
        %v896 = vrcp.pop %v838
        %v897 = vmul.f32 %v838, %v896
        %v898 = vsub.f32 1.0, %v897
        %v899 = vmul.f32 %v896, %v898
        %v900 = vadd.f32 %v896, %v899
        %vm901 = vweird.f32 %v838
        %vm902 = vweird.f32 %v896
        %vm903 = vmor %vm901, %vm902
        %v904 = vsel %vm903, %v896, %v900
        %v905 = vand.u32 2147483647, %v838
        %vm906 = vcmp.eq.f32.partialorder %v905, 8.507059e+37
        %v907 = vand.u32 %v838, 2147483648
        %v908 = vor.u32 1.1754944e-38, %v907
        %v909 = vsel %vm906, %v908, %v904
        %v910 = vmul.f32 1.0, %v909
        %v911 = vrcp.pop %v839
        %v912 = vmul.f32 %v839, %v911
        %v913 = vsub.f32 1.0, %v912
        %v914 = vmul.f32 %v911, %v913
        %v915 = vadd.f32 %v911, %v914
        %vm916 = vweird.f32 %v839
        %vm917 = vweird.f32 %v911
        %vm918 = vmor %vm916, %vm917
        %v919 = vsel %vm918, %v911, %v915
        %v920 = vand.u32 2147483647, %v839
        %vm921 = vcmp.eq.f32.partialorder %v920, 8.507059e+37
        %v922 = vand.u32 %v839, 2147483648
        %v923 = vor.u32 1.1754944e-38, %v922
        %v924 = vsel %vm921, %v923, %v919
        %v925 = vmul.f32 1.0, %v924
        %v926 = vrcp.pop %v840
        %v927 = vmul.f32 %v840, %v926
        %v928 = vsub.f32 1.0, %v927
        %v929 = vmul.f32 %v926, %v928
        %v930 = vadd.f32 %v926, %v929
        %vm931 = vweird.f32 %v840
        %vm932 = vweird.f32 %v926
        %vm933 = vmor %vm931, %vm932
        %v934 = vsel %vm933, %v926, %v930
        %v935 = vand.u32 2147483647, %v840
        %vm936 = vcmp.eq.f32.partialorder %v935, 8.507059e+37
        %v937 = vand.u32 %v840, 2147483648
        %v938 = vor.u32 1.1754944e-38, %v937
        %v939 = vsel %vm936, %v938, %v934
        %v940 = vmul.f32 1.0, %v939
        %v941 = vrcp.pop %v841
        %v942 = vmul.f32 %v841, %v941
        %v943 = vsub.f32 1.0, %v942
        %v944 = vmul.f32 %v941, %v943
        %v945 = vadd.f32 %v941, %v944
        %vm946 = vweird.f32 %v841
        %vm947 = vweird.f32 %v941
        %vm948 = vmor %vm946, %vm947
        %v949 = vsel %vm948, %v941, %v945
        %v950 = vand.u32 2147483647, %v841
        %vm951 = vcmp.eq.f32.partialorder %v950, 8.507059e+37
        %v952 = vand.u32 %v841, 2147483648
        %v953 = vor.u32 1.1754944e-38, %v952
        %v954 = vsel %vm951, %v953, %v949
        %v955 = vmul.f32 1.0, %v954
        %v956 = vrcp.pop %v842
        %v957 = vmul.f32 %v842, %v956
        %v958 = vsub.f32 1.0, %v957
        %v959 = vmul.f32 %v956, %v958
        %v960 = vadd.f32 %v956, %v959
        %vm961 = vweird.f32 %v842
        %vm962 = vweird.f32 %v956
        %vm963 = vmor %vm961, %vm962
        %v964 = vsel %vm963, %v956, %v960
        %v965 = vand.u32 2147483647, %v842
        %vm966 = vcmp.eq.f32.partialorder %v965, 8.507059e+37
        %v967 = vand.u32 %v842, 2147483648
        %v968 = vor.u32 1.1754944e-38, %v967
        %v969 = vsel %vm966, %v968, %v964
        %v970 = vmul.f32 1.0, %v969
        %v971 = vrcp.pop %v843
        %v972 = vmul.f32 %v843, %v971
        %v973 = vsub.f32 1.0, %v972
        %v974 = vmul.f32 %v971, %v973
        %v975 = vadd.f32 %v971, %v974
        %vm976 = vweird.f32 %v843
        %vm977 = vweird.f32 %v971
        %vm978 = vmor %vm976, %vm977
        %v979 = vsel %vm978, %v971, %v975
        %v980 = vand.u32 2147483647, %v843
        %vm981 = vcmp.eq.f32.partialorder %v980, 8.507059e+37
        %v982 = vand.u32 %v843, 2147483648
        %v983 = vor.u32 1.1754944e-38, %v982
        %v984 = vsel %vm981, %v983, %v979
        %v985 = vmul.f32 1.0, %v984
        %v986 = vrcp.pop %v844
        %v987 = vmul.f32 %v844, %v986
        %v988 = vsub.f32 1.0, %v987
        %v989 = vmul.f32 %v986, %v988
        %v990 = vadd.f32 %v986, %v989
        %vm991 = vweird.f32 %v844
        %vm992 = vweird.f32 %v986
        %vm993 = vmor %vm991, %vm992
        %v994 = vsel %vm993, %v986, %v990
        %v995 = vand.u32 2147483647, %v844
        %vm996 = vcmp.eq.f32.partialorder %v995, 8.507059e+37
        %v997 = vand.u32 %v844, 2147483648
        %v998 = vor.u32 1.1754944e-38, %v997
        %v999 = vsel %vm996, %v998, %v994
        %v1000 = vmul.f32 1.0, %v999
        %v1001 = vrcp.pop %v845
        %v1002 = vmul.f32 %v845, %v1001
        %v1003 = vsub.f32 1.0, %v1002
        %v1004 = vmul.f32 %v1001, %v1003
        %v1005 = vadd.f32 %v1001, %v1004
        %vm1006 = vweird.f32 %v845
        %vm1007 = vweird.f32 %v1001
        %vm1008 = vmor %vm1006, %vm1007
        %v1009 = vsel %vm1008, %v1001, %v1005
        %v1010 = vand.u32 2147483647, %v845
        %vm1011 = vcmp.eq.f32.partialorder %v1010, 8.507059e+37
        %v1012 = vand.u32 %v845, 2147483648
        %v1013 = vor.u32 1.1754944e-38, %v1012
        %v1014 = vsel %vm1011, %v1013, %v1009
        %v1015 = vmul.f32 1.0, %v1014
        %v1016 = vrcp.pop %v846
        %v1017 = vmul.f32 %v846, %v1016
        %v1018 = vsub.f32 1.0, %v1017
        %v1019 = vmul.f32 %v1016, %v1018
        %v1020 = vadd.f32 %v1016, %v1019
        %vm1021 = vweird.f32 %v846
        %vm1022 = vweird.f32 %v1016
        %vm1023 = vmor %vm1021, %vm1022
        %v1024 = vsel %vm1023, %v1016, %v1020
        %v1025 = vand.u32 2147483647, %v846
        %vm1026 = vcmp.eq.f32.partialorder %v1025, 8.507059e+37
        %v1027 = vand.u32 %v846, 2147483648
        %v1028 = vor.u32 1.1754944e-38, %v1027
        %v1029 = vsel %vm1026, %v1028, %v1024
        %v1030 = vmul.f32 1.0, %v1029
        %v1031 = vrcp.pop %v847
        %v1032 = vmul.f32 %v847, %v1031
        %v1033 = vsub.f32 1.0, %v1032
        %v1034 = vmul.f32 %v1031, %v1033
        %v1035 = vadd.f32 %v1031, %v1034
        %vm1036 = vweird.f32 %v847
        %vm1037 = vweird.f32 %v1031
        %vm1038 = vmor %vm1036, %vm1037
        %v1039 = vsel %vm1038, %v1031, %v1035
        %v1040 = vand.u32 2147483647, %v847
        %vm1041 = vcmp.eq.f32.partialorder %v1040, 8.507059e+37
        %v1042 = vand.u32 %v847, 2147483648
        %v1043 = vor.u32 1.1754944e-38, %v1042
        %v1044 = vsel %vm1041, %v1043, %v1039
        %v1045 = vmul.f32 1.0, %v1044
        %v1046 = vrcp.pop %v848
        %v1047 = vmul.f32 %v848, %v1046
        %v1048 = vsub.f32 1.0, %v1047
        %v1049 = vmul.f32 %v1046, %v1048
        %v1050 = vadd.f32 %v1046, %v1049
        %vm1051 = vweird.f32 %v848
        %vm1052 = vweird.f32 %v1046
        %vm1053 = vmor %vm1051, %vm1052
        %v1054 = vsel %vm1053, %v1046, %v1050
        %v1055 = vand.u32 2147483647, %v848
        %vm1056 = vcmp.eq.f32.partialorder %v1055, 8.507059e+37
        %v1057 = vand.u32 %v848, 2147483648
        %v1058 = vor.u32 1.1754944e-38, %v1057
        %v1059 = vsel %vm1056, %v1058, %v1054
        %v1060 = vmul.f32 1.0, %v1059
        %v1061 = vrcp.pop %v849
        %v1062 = vmul.f32 %v849, %v1061
        %v1063 = vsub.f32 1.0, %v1062
        %v1064 = vmul.f32 %v1061, %v1063
        %v1065 = vadd.f32 %v1061, %v1064
        %vm1066 = vweird.f32 %v849
        %vm1067 = vweird.f32 %v1061
        %vm1068 = vmor %vm1066, %vm1067
        %v1069 = vsel %vm1068, %v1061, %v1065
        %v1070 = vand.u32 2147483647, %v849
        %vm1071 = vcmp.eq.f32.partialorder %v1070, 8.507059e+37
        %v1072 = vand.u32 %v849, 2147483648
        %v1073 = vor.u32 1.1754944e-38, %v1072
        %v1074 = vsel %vm1071, %v1073, %v1069
        %v1075 = vmul.f32 1.0, %v1074
        %v1076 = vrcp.pop %v850
        %v1077 = vmul.f32 %v850, %v1076
        %v1078 = vsub.f32 1.0, %v1077
        %v1079 = vmul.f32 %v1076, %v1078
        %v1080 = vadd.f32 %v1076, %v1079
        %vm1081 = vweird.f32 %v850
        %vm1082 = vweird.f32 %v1076
        %vm1083 = vmor %vm1081, %vm1082
        %v1084 = vsel %vm1083, %v1076, %v1080
        %v1085 = vand.u32 2147483647, %v850
        %vm1086 = vcmp.eq.f32.partialorder %v1085, 8.507059e+37
        %v1087 = vand.u32 %v850, 2147483648
        %v1088 = vor.u32 1.1754944e-38, %v1087
        %v1089 = vsel %vm1086, %v1088, %v1084
        %v1090 = vmul.f32 1.0, %v1089
        %v1091 = vmul.f32 %v865, %v333
        %v1092 = vmul.f32 %v880, %v334
        %v1093 = vmul.f32 %v895, %v335
        %v1094 = vmul.f32 %v910, %v336
        %v1095 = vmul.f32 %v925, %v337
        %v1096 = vmul.f32 %v940, %v338
        %v1097 = vmul.f32 %v955, %v339
        %v1098 = vmul.f32 %v970, %v340
        %v1099 = vmul.f32 %v985, %v341
        %v1100 = vmul.f32 %v1000, %v342
        %v1101 = vmul.f32 %v1015, %v343
        %v1102 = vmul.f32 %v1030, %v344
        %v1103 = vmul.f32 %v1045, %v345
        %v1104 = vmul.f32 %v1060, %v346
        %v1105 = vmul.f32 %v1075, %v347
        %v1106 = vmul.f32 %v1090, %v348
        %1107 = vst [vmem:[%s298] sm:$0xff] %v1091
        %1108 = vst [vmem:[%s298 + $0x8] sm:$0xff] %v1092
        %1109 = vst [vmem:[%s298 + $0x10] sm:$0xff] %v1093
        %1110 = vst [vmem:[%s298 + $0x18] sm:$0xff] %v1094
        %1111 = vst [vmem:[%s298 + $0x20] sm:$0xff] %v1095
        %1112 = vst [vmem:[%s298 + $0x28] sm:$0xff] %v1096
        %1113 = vst [vmem:[%s298 + $0x30] sm:$0xff] %v1097
        %1114 = vst [vmem:[%s298 + $0x38] sm:$0xff] %v1098
        %1115 = vst [vmem:[%s298 + $0x40] sm:$0xff] %v1099
        %1116 = vst [vmem:[%s298 + $0x48] sm:$0xff] %v1100
        %1117 = vst [vmem:[%s298 + $0x50] sm:$0xff] %v1101
        %1118 = vst [vmem:[%s298 + $0x58] sm:$0xff] %v1102
        %1119 = vst [vmem:[%s298 + $0x60] sm:$0xff] %v1103
        %1120 = vst [vmem:[%s298 + $0x68] sm:$0xff] %v1104
        %1121 = vst [vmem:[%s298 + $0x70] sm:$0xff] %v1105
        %1122 = vst [vmem:[%s298 + $0x78] sm:$0xff] %v1106
        %s1123 = sand.u32 %s184, 1
        %s1124 = scalar_lea.sflag [#allocation4], %s1123
        %s1125 = sand.u32 %s184, 1
        %s1126 = smul.addr %s1125, 128
        %s1127 = scalar_lea.vmem [#allocation5], %s1126
        // Predicated region
        $region53: #{tpu_custom_call.1} parent=47 // pred_check
          %p1128 = pneg %p194
        $region54: #{tpu_custom_call.1} parent=47 // pred_check_branch
          %1130 = sbr.rel (%p1128) target = $region56
        $region55: #{tpu_custom_call.1} parent=47 // pred_region
          %1132 = vsyncadd %s1124, 0
          %s1133 = smul.addr %s24, 16
          %s1134 = smul.addr %s1133, 8
          %s1135 = scalar_lea.hbm %s7, %s1134
          %s1136 = sshll.u32 %s1127, 4
          %s1137 = int_to_ptr.vmem [resolvable:$true] %s1136
          %s1138 = sshll.u32 %s1135, 4
          %s1139 = int_to_ptr.hbm [resolvable:$true] %s1138
          %1144 = dma.vmem_to_hbm [thread:$0]  %s1137, 2048, %s1139, %s1124, 256, 256, 16
        $region56: #{tpu_custom_call.1} parent=47 // pred_fallthru
          _
      $region48: #{tpu_custom_call.1} parent=5 // pred_fallthru
        _
      %p1145 = scmp.le.s32.totalorder 2, %s19
      // Predicated region
      $region57: #{tpu_custom_call.1} parent=5 // pred_check
        %p1146 = pneg %p1145
      $region58: #{tpu_custom_call.1} parent=5 // pred_check_branch
        %1148 = sbr.rel (%p1146) target = $region60
      $region59: #{tpu_custom_call.1} parent=5 // pred_region
        %s1149 = ssub.s32 %s19, 2
        // Predicated region
        $region61: #{tpu_custom_call.1} parent=59 // pred_check
          %p1150 = pneg %p200
        $region62: #{tpu_custom_call.1} parent=59 // pred_check_branch
          %1152 = sbr.rel (%p1150) target = $region64
        $region63: #{tpu_custom_call.1} parent=59 // pred_region
          %s1153 = sand.u32 %s185, 1
          %s1154 = scalar_lea.sflag [#allocation4], %s1153
          %s1155 = sand.u32 %s185, 1
          %s1156 = smul.addr %s1155, 128
          %s1157 = scalar_lea.vmem [#allocation5], %s1156
          %1159 = dma.done %s1154, 2048
        $region64: #{tpu_custom_call.1} parent=59 // pred_fallthru
          _
      $region60: #{tpu_custom_call.1} parent=5 // pred_fallthru
        _
    $region6: #{tpu_custom_call.1} parent=1 // loop_footer
      %s23 = sadd.s32 1, %s19
    $region7: #{tpu_custom_call.1} parent=1 // loop_footer_branch
      %18 = sbr.rel target = $region3
    $region8: #{tpu_custom_call.1} parent=1 // loop_exit
      _
    %1160 = vsyncpa [#allocation3], 1
    %s1161 = scalar_lea.sflag [#allocation3], 1
    %1162 = vsyncpa %s1161, 1
    %1163 = vsyncpa [#allocation4], 1
    %s1164 = scalar_lea.sflag [#allocation4], 1
    %1165 = vsyncpa %s1164, 1

</llo_original>
